<compile_context>
chip_gen: v6e
topology: v6e:2x2x1
jax: 0.10.0
libtpu: 0.0.40
codegen_flags: <defaults>
</compile_context>

<pallas_src>
import jax
import jax.numpy as jnp
from jax.experimental import pallas as pl
from jax.experimental.pallas import tpu as pltpu


def _make_series_decomp_kernel(kernel_size: int):
    K = kernel_size
    P = (K - 1) // 2

    def kernel(x_ref, res_ref, mean_ref, xpad_ref):
        x = x_ref[...]                       # (TB, L, C)
        TB, L, C = x.shape
        xf = x.astype(jnp.float32)

        # Build the replicate-padded series in VMEM scratch: (TB, L + 2P, C).
        xpad_ref[:, P:P + L, :] = xf
        if P > 0:
            xpad_ref[:, 0:P, :] = jnp.broadcast_to(xf[:, 0:1, :], (TB, P, C))
            xpad_ref[:, P + L:P + L + P, :] = jnp.broadcast_to(
                xf[:, L - 1:L, :], (TB, P, C))

        # Unrolled K-tap window sum (VPU), accumulated in f32.
        acc = xpad_ref[:, 0:L, :]
        for j in range(1, K):
            acc = acc + xpad_ref[:, j:j + L, :]
        mean = acc * jnp.float32(1.0 / K)

        mean_ref[...] = mean.astype(mean_ref.dtype)
        res_ref[...] = (xf - mean).astype(res_ref.dtype)

    return kernel


def series_decomp(x, kernel_size: int):
    """x: (B, L, C) time series. Returns (res, moving_mean), each (B, L, C)."""
    assert x.ndim == 3, "expected x of shape (batch, seq_len, channels)"
    assert kernel_size >= 1 and kernel_size % 2 == 1, (
        "series_decomp requires an odd kernel_size (even sizes make the "
        "PyTorch module itself produce mismatched shapes).")
    B, L, C = x.shape
    P = (kernel_size - 1) // 2
    itemsize = jnp.dtype(x.dtype).itemsize

    # Batch-tile size targeting ~1 MiB per stream tile:
    # double-buffered (1 input + 2 outputs) + f32 padded scratch ~= 7-8 MiB peak,
    # safe on every generation without raising vmem_limit_bytes.
    target_tile_bytes = 1 << 20
    per_batch_bytes = max(1, L * C * itemsize)
    TB = max(1, min(B, target_tile_bytes // per_batch_bytes))
    grid = (pl.cdiv(B, TB),)

    blk = (TB, L, C)
    idx = lambda b: (b, 0, 0)

    cost = pl.CostEstimate(
        flops=(kernel_size + 2) * B * L * C,
        transcendentals=0,
        bytes_accessed=3 * B * L * C * itemsize,   # read x once, write res + mean
    )

    res, mean = pl.pallas_call(
        _make_series_decomp_kernel(kernel_size),
        out_shape=(
            jax.ShapeDtypeStruct((B, L, C), x.dtype),
            jax.ShapeDtypeStruct((B, L, C), x.dtype),
        ),
        grid_spec=pltpu.PrefetchScalarGridSpec(
            num_scalar_prefetch=0,
            grid=grid,
            in_specs=[pl.BlockSpec(blk, idx)],
            out_specs=[pl.BlockSpec(blk, idx), pl.BlockSpec(blk, idx)],
            scratch_shapes=[pltpu.VMEM((TB, L + 2 * P, C), jnp.float32)],
        ),
        compiler_params=pltpu.CompilerParams(
            dimension_semantics=("parallel",),
        ),
        cost_estimate=cost,
    )(x)
    return res, mean


def _series_decomp_ref(x, kernel_size):
    """Plain-JAX reference matching the PyTorch module."""
    K = kernel_size
    P = (K - 1) // 2
    L = x.shape[1]
    front = jnp.repeat(x[:, :1, :], P, axis=1)
    end = jnp.repeat(x[:, -1:, :], P, axis=1)
    xpad = jnp.concatenate([front, x, end], axis=1)
    mean = jnp.mean(jnp.stack([xpad[:, j:j + L, :] for j in range(K)], 0), 0)
    return x - mean, mean


if __name__ == "__main__":
    # Small shapes consistent with the module: batch=2, seq_len=32, channels=16.
    B, L, C = 2, 32, 16
    kernel_size = 5

    key = jax.random.PRNGKey(0)
    x = jax.random.normal(key, (B, L, C), dtype=jnp.float32)

    res, mean = series_decomp(x, kernel_size)
    res = jax.block_until_ready(res)
    mean = jax.block_until_ready(mean)

    res_ref, mean_ref = _series_decomp_ref(x, kernel_size)
    assert res.shape == (B, L, C) and mean.shape == (B, L, C)
    assert jnp.allclose(mean, mean_ref, atol=1e-5, rtol=1e-5)
    assert jnp.allclose(res, res_ref, atol=1e-5, rtol=1e-5)
    assert jnp.allclose(res + mean, x, atol=1e-5, rtol=1e-5)

    print("KERNEL_OK")
</pallas_src>

<mosaic_0001>
module attributes {stable_mosaic.version = 11 : i64} {
  func.func @kernel(%arg0: i32, %arg1: memref<2x32x16xf32, #tpu.memory_space<vmem>>, %arg2: memref<2x32x16xf32, #tpu.memory_space<vmem>>, %arg3: memref<2x32x16xf32, #tpu.memory_space<vmem>>, %arg4: memref<2x36x16xf32, #tpu.memory_space<vmem>>) attributes {dimension_semantics = [#tpu.dimension_semantics<parallel>], iteration_bounds = array<i64: 1>, scalar_prefetch = 0 : i64, scratch_operands = 1 : i64, tpu.core_type = #tpu.core_type<tc>, window_params = [{transform_indices = @transform_0, window_bounds = array<i64: 2, 32, 16>}, {transform_indices = @transform_1, window_bounds = array<i64: 2, 32, 16>}, {transform_indices = @transform_2, window_bounds = array<i64: 2, 32, 16>}]} {
    %c0 = arith.constant 0 : index
    %c0_0 = arith.constant 0 : index
    %c0_1 = arith.constant 0 : index
    %0 = vector.load %arg1[%c0, %c0_0, %c0_1] : memref<2x32x16xf32, #tpu.memory_space<vmem>>, vector<2x32x16xf32>
    %c0_2 = arith.constant 0 : index
    %c2 = arith.constant 2 : index
    %c0_3 = arith.constant 0 : index
    %1 = vector.load %arg4[%c0_2, %c2, %c0_3] : memref<2x36x16xf32, #tpu.memory_space<vmem>>, vector<2x32x16xf32>
    tpu.vector_store %arg4[%c0_2, %c2, %c0_3], %0 {strides = array<i32>} : memref<2x36x16xf32, #tpu.memory_space<vmem>>, vector<2x32x16xf32>,
    %2 = vector.extract_strided_slice %0 {offsets = [0, 0, 0], sizes = [2, 1, 16], strides = [1, 1, 1]} : vector<2x32x16xf32> to vector<2x1x16xf32>
    %3 = vector.shape_cast %2 : vector<2x1x16xf32> to vector<2x1x16xf32>
    %4 = vector.broadcast %3 : vector<2x1x16xf32> to vector<2x2x16xf32>
    %c0_4 = arith.constant 0 : index
    %c0_5 = arith.constant 0 : index
    %c0_6 = arith.constant 0 : index
    %5 = vector.load %arg4[%c0_4, %c0_5, %c0_6] : memref<2x36x16xf32, #tpu.memory_space<vmem>>, vector<2x2x16xf32>
    tpu.vector_store %arg4[%c0_4, %c0_5, %c0_6], %4 {strides = array<i32>} : memref<2x36x16xf32, #tpu.memory_space<vmem>>, vector<2x2x16xf32>,
    %6 = vector.extract_strided_slice %0 {offsets = [0, 31, 0], sizes = [2, 1, 16], strides = [1, 1, 1]} : vector<2x32x16xf32> to vector<2x1x16xf32>
    %7 = vector.shape_cast %6 : vector<2x1x16xf32> to vector<2x1x16xf32>
    %8 = vector.broadcast %7 : vector<2x1x16xf32> to vector<2x2x16xf32>
    %c0_7 = arith.constant 0 : index
    %c34 = arith.constant 34 : index
    %c0_8 = arith.constant 0 : index
    %9 = vector.load %arg4[%c0_7, %c34, %c0_8] : memref<2x36x16xf32, #tpu.memory_space<vmem>>, vector<2x2x16xf32>
    tpu.vector_store %arg4[%c0_7, %c34, %c0_8], %8 {strides = array<i32>} : memref<2x36x16xf32, #tpu.memory_space<vmem>>, vector<2x2x16xf32>,
    %c0_9 = arith.constant 0 : index
    %c0_10 = arith.constant 0 : index
    %c0_11 = arith.constant 0 : index
    %10 = vector.load %arg4[%c0_9, %c0_10, %c0_11] : memref<2x36x16xf32, #tpu.memory_space<vmem>>, vector<2x32x16xf32>
    %c0_12 = arith.constant 0 : index
    %c1 = arith.constant 1 : index
    %c0_13 = arith.constant 0 : index
    %11 = vector.load %arg4[%c0_12, %c1, %c0_13] : memref<2x36x16xf32, #tpu.memory_space<vmem>>, vector<2x32x16xf32>
    %12 = arith.addf %10, %11 : vector<2x32x16xf32>
    %c0_14 = arith.constant 0 : index
    %c2_15 = arith.constant 2 : index
    %c0_16 = arith.constant 0 : index
    %13 = vector.load %arg4[%c0_14, %c2_15, %c0_16] : memref<2x36x16xf32, #tpu.memory_space<vmem>>, vector<2x32x16xf32>
    %14 = arith.addf %12, %13 : vector<2x32x16xf32>
    %c0_17 = arith.constant 0 : index
    %c3 = arith.constant 3 : index
    %c0_18 = arith.constant 0 : index
    %15 = vector.load %arg4[%c0_17, %c3, %c0_18] : memref<2x36x16xf32, #tpu.memory_space<vmem>>, vector<2x32x16xf32>
    %16 = arith.addf %14, %15 : vector<2x32x16xf32>
    %c0_19 = arith.constant 0 : index
    %c4 = arith.constant 4 : index
    %c0_20 = arith.constant 0 : index
    %17 = vector.load %arg4[%c0_19, %c4, %c0_20] : memref<2x36x16xf32, #tpu.memory_space<vmem>>, vector<2x32x16xf32>
    %18 = arith.addf %16, %17 : vector<2x32x16xf32>
    %cst = arith.constant 2.000000e-01 : f32
    %19 = vector.broadcast %cst : f32 to vector<2x32x16xf32>
    %20 = arith.mulf %18, %19 : vector<2x32x16xf32>
    %c0_21 = arith.constant 0 : index
    %c0_22 = arith.constant 0 : index
    %c0_23 = arith.constant 0 : index
    %21 = vector.load %arg3[%c0_21, %c0_22, %c0_23] : memref<2x32x16xf32, #tpu.memory_space<vmem>>, vector<2x32x16xf32>
    tpu.vector_store %arg3[%c0_21, %c0_22, %c0_23], %20 {strides = array<i32>} : memref<2x32x16xf32, #tpu.memory_space<vmem>>, vector<2x32x16xf32>,
    %22 = arith.subf %0, %20 : vector<2x32x16xf32>
    %c0_24 = arith.constant 0 : index
    %c0_25 = arith.constant 0 : index
    %c0_26 = arith.constant 0 : index
    %23 = vector.load %arg2[%c0_24, %c0_25, %c0_26] : memref<2x32x16xf32, #tpu.memory_space<vmem>>, vector<2x32x16xf32>
    tpu.vector_store %arg2[%c0_24, %c0_25, %c0_26], %22 {strides = array<i32>} : memref<2x32x16xf32, #tpu.memory_space<vmem>>, vector<2x32x16xf32>,
    return
  }
  func.func @transform_0(%arg0: i32) -> (i32, i32, i32) {
    %c0_i32 = arith.constant 0 : i32
    %c0_i32_0 = arith.constant 0 : i32
    %c0_i32_1 = arith.constant 0 : i32
    return %arg0, %c0_i32, %c0_i32_0 : i32, i32, i32
  }
  func.func @transform_1(%arg0: i32) -> (i32, i32, i32) {
    %c0_i32 = arith.constant 0 : i32
    %c0_i32_0 = arith.constant 0 : i32
    %c0_i32_1 = arith.constant 0 : i32
    return %arg0, %c0_i32, %c0_i32_0 : i32, i32, i32
  }
  func.func @transform_2(%arg0: i32) -> (i32, i32, i32) {
    %c0_i32 = arith.constant 0 : i32
    %c0_i32_0 = arith.constant 0 : i32
    %c0_i32_1 = arith.constant 0 : i32
    return %arg0, %c0_i32, %c0_i32_0 : i32, i32, i32
  }
}

</mosaic_0001>

<llo_original>
// kernel: tpu_custom_call.1
$region0: #{tpu_custom_call.1}
  #allocation0 [shape = 'u32[]', space=smem, size = 0x4, offset = 0x4, fixed_abs, tag = 'smem constant byte address 0x4 - core index']
  #allocation1 [shape = 'u32[144,128]{1,0:T(1,128)}', space=vmem, size = 0x12000, scoped, tag = 'internal scratch']
  #allocation2 [shape = 'f32[2,36,16]{2,1,0:T(8,128)}', space=vmem, size = 0xa000, scoped, tag = 'scratch operand']
  %s0 = inlined_call_operand.vmem [shape: f32[2,32,16], index: 0, kind: input, shape index: {}]
  %s1 = inlined_call_operand.vmem [shape: f32[2,32,16], index: 1, kind: output, shape index: {0}]
  %s2 = inlined_call_operand.vmem [shape: f32[2,32,16], index: 2, kind: output, shape index: {1}]
  %3 = xla_tuple %s1, %s2
  %s4 = sld [smem:[#allocation0]]
  $region22: #{tpu_custom_call.1} parent=0
    _
  %s6 = ssub.s32 1, %s4
  %s7 = scalar_select 0, %s6, %s4
  // Predicated region
  $region2: #{tpu_custom_call.1} parent=0 // pred_check
    _
  $region3: #{tpu_custom_call.1} parent=0 // pred_check_branch
    %9 = sbr.rel (0) target = $region5
  $region4: #{tpu_custom_call.1} parent=0 // pred_region
    _
  $region5: #{tpu_custom_call.1} parent=0 // pred_fallthru
    _
  %v10 = vld [vmem:[%s0] sm:$0xff]
  %v11 = vld [vmem:[%s0 + $0x8] sm:$0xff]
  %v12 = vld [vmem:[%s0 + $0x10] sm:$0xff]
  %v13 = vld [vmem:[%s0 + $0x18] sm:$0xff]
  %v14 = vld [vmem:[%s0 + $0x20] sm:$0xff]
  %v15 = vld [vmem:[%s0 + $0x28] sm:$0xff]
  %v16 = vld [vmem:[%s0 + $0x30] sm:$0xff]
  %v17 = vld [vmem:[%s0 + $0x38] sm:$0xff]
  %vm18 = vcmask 130048
  %19 = vst.msk [vmem:[#allocation2 + $0x2] sm:$0xff] %vm18, %v10
  %20 = vst.msk [vmem:[#allocation2 + $0xa] sm:$0xff] %vm18, %v11
  %21 = vst.msk [vmem:[#allocation2 + $0x12] sm:$0xff] %vm18, %v12
  %22 = vst.msk [vmem:[#allocation2 + $0x1a] sm:$0xff] %vm18, %v13
  %23 = vst.msk [vmem:[#allocation2 + $0x2a] sm:$0xff] %vm18, %v14
  %24 = vst.msk [vmem:[#allocation2 + $0x32] sm:$0xff] %vm18, %v15
  %25 = vst.msk [vmem:[#allocation2 + $0x3a] sm:$0xff] %vm18, %v16
  %26 = vst.msk [vmem:[#allocation2 + $0x42] sm:$0xff] %vm18, %v17
  %v27 = vlaneseq
  %v28 = vshrl.u32 %v27, 7
  %v29 = vsub.s32 0, %v28
  %v30 = vrot.slane %v10, %v29
  %v31 = vlaneseq
  %v32 = vshrl.u32 %v31, 7
  %v33 = vsub.s32 0, %v32
  %v34 = vrot.slane %v14, %v33
  %vm35 = vcmask 123904
  %36 = vst.msk [vmem:[#allocation2] sm:$0x3] %vm35, %v30
  %37 = vst.msk [vmem:[#allocation2 + $0x28] sm:$0x3] %vm35, %v34
  %v38 = vlaneseq
  %v39 = vshrl.u32 %v38, 7
  %v40 = vsub.s32 7, %v39
  %v41 = vrot.slane %v13, %v40
  %v42 = vlaneseq
  %v43 = vshrl.u32 %v42, 7
  %v44 = vsub.s32 7, %v43
  %v45 = vrot.slane %v17, %v44
  %46 = vst.msk [vmem:[#allocation2 + $0x22] sm:$0x3] %vm35, %v41
  %47 = vst.msk [vmem:[#allocation2 + $0x4a] sm:$0x3] %vm35, %v45
  %v48 = vld [vmem:[#allocation2] sm:$0xff]
  %v49 = vld [vmem:[#allocation2 + $0x8] sm:$0xff]
  %v50 = vld [vmem:[#allocation2 + $0x10] sm:$0xff]
  %v51 = vld [vmem:[#allocation2 + $0x18] sm:$0xff]
  %v52 = vld [vmem:[#allocation2 + $0x28] sm:$0xff]
  %v53 = vld [vmem:[#allocation2 + $0x30] sm:$0xff]
  %v54 = vld [vmem:[#allocation2 + $0x38] sm:$0xff]
  %v55 = vld [vmem:[#allocation2 + $0x40] sm:$0xff]
  %v56 = vld [vmem:[#allocation2 + $0x1] sm:$0xff]
  %v57 = vld [vmem:[#allocation2 + $0x9] sm:$0xff]
  %v58 = vld [vmem:[#allocation2 + $0x11] sm:$0xff]
  %v59 = vld [vmem:[#allocation2 + $0x19] sm:$0xff]
  %v60 = vld [vmem:[#allocation2 + $0x29] sm:$0xff]
  %v61 = vld [vmem:[#allocation2 + $0x31] sm:$0xff]
  %v62 = vld [vmem:[#allocation2 + $0x39] sm:$0xff]
  %v63 = vld [vmem:[#allocation2 + $0x41] sm:$0xff]
  %v64 = vadd.f32 %v48, %v56
  %v65 = vadd.f32 %v49, %v57
  %v66 = vadd.f32 %v50, %v58
  %v67 = vadd.f32 %v51, %v59
  %v68 = vadd.f32 %v52, %v60
  %v69 = vadd.f32 %v53, %v61
  %v70 = vadd.f32 %v54, %v62
  %v71 = vadd.f32 %v55, %v63
  %v72 = vld [vmem:[#allocation2 + $0x2] sm:$0xff]
  %v73 = vld [vmem:[#allocation2 + $0xa] sm:$0xff]
  %v74 = vld [vmem:[#allocation2 + $0x12] sm:$0xff]
  %v75 = vld [vmem:[#allocation2 + $0x1a] sm:$0xff]
  %v76 = vld [vmem:[#allocation2 + $0x2a] sm:$0xff]
  %v77 = vld [vmem:[#allocation2 + $0x32] sm:$0xff]
  %v78 = vld [vmem:[#allocation2 + $0x3a] sm:$0xff]
  %v79 = vld [vmem:[#allocation2 + $0x42] sm:$0xff]
  %v80 = vadd.f32 %v64, %v72
  %v81 = vadd.f32 %v65, %v73
  %v82 = vadd.f32 %v66, %v74
  %v83 = vadd.f32 %v67, %v75
  %v84 = vadd.f32 %v68, %v76
  %v85 = vadd.f32 %v69, %v77
  %v86 = vadd.f32 %v70, %v78
  %v87 = vadd.f32 %v71, %v79
  %v88 = vld [vmem:[#allocation2 + $0x3] sm:$0xff]
  %v89 = vld [vmem:[#allocation2 + $0xb] sm:$0xff]
  %v90 = vld [vmem:[#allocation2 + $0x13] sm:$0xff]
  %v91 = vld [vmem:[#allocation2 + $0x1b] sm:$0xff]
  %v92 = vld [vmem:[#allocation2 + $0x2b] sm:$0xff]
  %v93 = vld [vmem:[#allocation2 + $0x33] sm:$0xff]
  %v94 = vld [vmem:[#allocation2 + $0x3b] sm:$0xff]
  %v95 = vld [vmem:[#allocation2 + $0x43] sm:$0xff]
  %v96 = vadd.f32 %v80, %v88
  %v97 = vadd.f32 %v81, %v89
  %v98 = vadd.f32 %v82, %v90
  %v99 = vadd.f32 %v83, %v91
  %v100 = vadd.f32 %v84, %v92
  %v101 = vadd.f32 %v85, %v93
  %v102 = vadd.f32 %v86, %v94
  %v103 = vadd.f32 %v87, %v95
  %v104 = vld [vmem:[#allocation2 + $0x4] sm:$0xff]
  %v105 = vld [vmem:[#allocation2 + $0xc] sm:$0xff]
  %v106 = vld [vmem:[#allocation2 + $0x14] sm:$0xff]
  %v107 = vld [vmem:[#allocation2 + $0x1c] sm:$0xff]
  %v108 = vld [vmem:[#allocation2 + $0x2c] sm:$0xff]
  %v109 = vld [vmem:[#allocation2 + $0x34] sm:$0xff]
  %v110 = vld [vmem:[#allocation2 + $0x3c] sm:$0xff]
  %v111 = vld [vmem:[#allocation2 + $0x44] sm:$0xff]
  %v112 = vadd.f32 %v96, %v104
  %v113 = vadd.f32 %v97, %v105
  %v114 = vadd.f32 %v98, %v106
  %v115 = vadd.f32 %v99, %v107
  %v116 = vadd.f32 %v100, %v108
  %v117 = vadd.f32 %v101, %v109
  %v118 = vadd.f32 %v102, %v110
  %v119 = vadd.f32 %v103, %v111
  %v120 = vmul.f32 %v112, 0.2
  %v121 = vmul.f32 %v113, 0.2
  %v122 = vmul.f32 %v114, 0.2
  %v123 = vmul.f32 %v115, 0.2
  %v124 = vmul.f32 %v116, 0.2
  %v125 = vmul.f32 %v117, 0.2
  %v126 = vmul.f32 %v118, 0.2
  %v127 = vmul.f32 %v119, 0.2
  %128 = vst.msk [vmem:[%s2] sm:$0xff] %vm18, %v120
  %129 = vst.msk [vmem:[%s2 + $0x8] sm:$0xff] %vm18, %v121
  %130 = vst.msk [vmem:[%s2 + $0x10] sm:$0xff] %vm18, %v122
  %131 = vst.msk [vmem:[%s2 + $0x18] sm:$0xff] %vm18, %v123
  %132 = vst.msk [vmem:[%s2 + $0x20] sm:$0xff] %vm18, %v124
  %133 = vst.msk [vmem:[%s2 + $0x28] sm:$0xff] %vm18, %v125
  %134 = vst.msk [vmem:[%s2 + $0x30] sm:$0xff] %vm18, %v126
  %135 = vst.msk [vmem:[%s2 + $0x38] sm:$0xff] %vm18, %v127
  %v136 = vsub.f32 %v10, %v120
  %v137 = vsub.f32 %v11, %v121
  %v138 = vsub.f32 %v12, %v122
  %v139 = vsub.f32 %v13, %v123
  %v140 = vsub.f32 %v14, %v124
  %v141 = vsub.f32 %v15, %v125
  %v142 = vsub.f32 %v16, %v126
  %v143 = vsub.f32 %v17, %v127
  %144 = vst.msk [vmem:[%s1] sm:$0xff] %vm18, %v136
  %145 = vst.msk [vmem:[%s1 + $0x8] sm:$0xff] %vm18, %v137
  %146 = vst.msk [vmem:[%s1 + $0x10] sm:$0xff] %vm18, %v138
  %147 = vst.msk [vmem:[%s1 + $0x18] sm:$0xff] %vm18, %v139
  %148 = vst.msk [vmem:[%s1 + $0x20] sm:$0xff] %vm18, %v140
  %149 = vst.msk [vmem:[%s1 + $0x28] sm:$0xff] %vm18, %v141
  %150 = vst.msk [vmem:[%s1 + $0x30] sm:$0xff] %vm18, %v142
  %151 = vst.msk [vmem:[%s1 + $0x38] sm:$0xff] %vm18, %v143
  // Predicated region
  $region6: #{tpu_custom_call.1} parent=0 // pred_check
    _
  $region7: #{tpu_custom_call.1} parent=0 // pred_check_branch
    %153 = sbr.rel (0) target = $region9
  $region8: #{tpu_custom_call.1} parent=0 // pred_region
    _
  $region9: #{tpu_custom_call.1} parent=0 // pred_fallthru
    _
  // Predicated region
  $region10: #{tpu_custom_call.1} parent=0 // pred_check
    _
  $region11: #{tpu_custom_call.1} parent=0 // pred_check_branch
    %155 = sbr.rel (0) target = $region13
  $region12: #{tpu_custom_call.1} parent=0 // pred_region
    _
  $region13: #{tpu_custom_call.1} parent=0 // pred_fallthru
    _
  // Predicated region
  $region14: #{tpu_custom_call.1} parent=0 // pred_check
    _
  $region15: #{tpu_custom_call.1} parent=0 // pred_check_branch
    %157 = sbr.rel (0) target = $region17
  $region16: #{tpu_custom_call.1} parent=0 // pred_region
    _
  $region17: #{tpu_custom_call.1} parent=0 // pred_fallthru
    _
  // Predicated region
  $region18: #{tpu_custom_call.1} parent=0 // pred_check
    _
  $region19: #{tpu_custom_call.1} parent=0 // pred_check_branch
    %159 = sbr.rel (0) target = $region21
  $region20: #{tpu_custom_call.1} parent=0 // pred_region
    _
  $region21: #{tpu_custom_call.1} parent=0 // pred_fallthru
    _

</llo_original>
